<compile_context>
chip_gen: v6e
topology: v6e:2x2x1
jax: 0.10.0
libtpu: 0.0.40
codegen_flags: <defaults>
</compile_context>

<pallas_src>
import jax
import jax.numpy as jnp
from jax import lax
from jax.experimental import pallas as pl
from jax.experimental.pallas import tpu as pltpu

EPS = 1e-5  # nn.LayerNorm default


def _expand_norm_kernel(x_ref, w_ref, mdn_ref, up_ref, beta_ref, o_ref):
    # x_ref: (tm, dim)            w_ref:   (dim, C)      mdn_ref: (C, G=64)
    # up_ref: (G, C)  (group->channel broadcast with gamma folded in)
    # beta_ref: (1, C)            o_ref:   (tm, C)
    h = jnp.dot(x_ref[...], w_ref[...], preferred_element_type=jnp.float32)

    # Per-group first / second moments via two back-to-back rectangular
    # matmuls on the MXU (single-pass variance: no centered second pass, so
    # the second reduction does not wait on a VPU pass over a centered h).
    mdn = mdn_ref[...]
    mean = jnp.dot(h, mdn, preferred_element_type=jnp.float32)        # (tm, G)
    msq = jnp.dot(h * h, mdn, preferred_element_type=jnp.float32)     # (tm, G)
    inv = lax.rsqrt(msq - mean * mean + EPS)                          # (tm, G)

    # Broadcast per-group scale / shift back to all C lanes; gamma is folded
    # into up_ref, so the affine scale costs nothing extra.  beta stays as a
    # cheap fused (1, C) broadcast add in the epilogue.
    up = up_ref[...]
    scale = jnp.dot(inv, up, preferred_element_type=jnp.float32)          # (tm, C)
    shift = jnp.dot(-mean * inv, up, preferred_element_type=jnp.float32)  # (tm, C)
    o_ref[...] = (h * scale + shift + beta_ref[...]).astype(o_ref.dtype)


def patch_expand_x8(x, w_expand, gamma, beta, H, W, *, tm=256,
                    compute_dtype=jnp.bfloat16):
    """x: (B, H*W, dim).  w_expand: (2*dim, dim) (PyTorch Linear layout).
    gamma/beta: (dim//32,).  Returns (B, 64*H*W, dim//32) float32."""
    B, L, dim = x.shape
    assert L == H * W, "input feature has wrong size"
    assert dim % 32 == 0, "dim must be a multiple of 32"
    C = 2 * dim          # expanded channels
    G = 64               # number of pixel-shuffle groups (p1 * p2)
    c = C // G           # = dim // 32, LayerNorm width
    N = B * L

    # Token tile: big enough to fill the MXU / DMA pipeline, but no bigger
    # than the (sublane-rounded) token count.  Pad tokens to a multiple of tm
    # so no tail is dropped; padded rows are finite (var=0 -> output 0) and
    # sliced away afterwards.
    tm = min(tm, pl.cdiv(N, 8) * 8)
    assert tm % 8 == 0
    n_pad = pl.cdiv(N, tm) * tm

    x_flat = x.reshape(N, dim).astype(compute_dtype)
    if n_pad != N:
        x_flat = jnp.pad(x_flat, ((0, n_pad - N), (0, 0)))
    w = jnp.transpose(w_expand).astype(compute_dtype)                 # (dim, C)

    # Rectangular group reduce / broadcast constants.
    gid = jnp.arange(C) // c                                          # group id per channel
    onehot = (gid[:, None] == jnp.arange(G)[None, :]).astype(jnp.float32)  # (C, G)
    m_dn = onehot / float(c)                                          # (C, G): group mean
    gamma_t = jnp.tile(gamma.astype(jnp.float32), G)                  # (C,): gamma[j % c]
    up_gamma = onehot.T * gamma_t[None, :]                            # (G, C): broadcast * gamma
    beta_t = jnp.tile(beta.astype(jnp.float32), G).reshape(1, C)      # (1, C)

    grid = (n_pad // tm,)
    y_flat = pl.pallas_call(
        _expand_norm_kernel,
        out_shape=jax.ShapeDtypeStruct((n_pad, C), jnp.float32),
        grid_spec=pltpu.PrefetchScalarGridSpec(
            num_scalar_prefetch=0,
            grid=grid,
            in_specs=[
                pl.BlockSpec((tm, dim), lambda i: (i, 0)),   # streamed tokens
                pl.BlockSpec((dim, C), lambda i: (0, 0)),    # resident weight
                pl.BlockSpec((C, G), lambda i: (0, 0)),      # resident down-reduce
                pl.BlockSpec((G, C), lambda i: (0, 0)),      # resident broadcast*gamma
                pl.BlockSpec((1, C), lambda i: (0, 0)),      # resident beta
            ],
            out_specs=pl.BlockSpec((tm, C), lambda i: (i, 0)),
        ),
        compiler_params=pltpu.CompilerParams(
            dimension_semantics=("parallel",),               # megacore-shardable
            vmem_limit_bytes=48 * 1024 * 1024,               # stay under v7x 64 MiB/TC
        ),
    )(x_flat, w, m_dn, up_gamma, beta_t)

    y_flat = y_flat[:N]
    # x8 pixel shuffle: 'b h w (p1 p2 c) -> b (h p1) (w p2) c', p1=p2=8.
    # TODO(synk): pure data movement; ideally fused into the downstream
    # consumer instead of being a separate XLA HBM round trip.
    y = y_flat.reshape(B, H, W, 8, 8, c)
    y = jnp.transpose(y, (0, 1, 3, 2, 4, 5))                 # b h p1 w p2 c
    return y.reshape(B, 64 * H * W, c)


def _reference(x, w_expand, gamma, beta, H, W, compute_dtype=jnp.float32):
    """Pure-JAX reference matching the PyTorch forward.  `compute_dtype`
    optionally rounds x/w like the kernel's MXU input cast (math stays f32)."""
    xc = x.astype(compute_dtype).astype(jnp.float32)
    wc = w_expand.astype(compute_dtype).astype(jnp.float32)
    h = jnp.einsum("blc,oc->blo", xc, wc, precision=lax.Precision.HIGHEST)
    B, L, C = h.shape
    c = C // 64
    h = h.reshape(B, H, W, 8, 8, c)
    h = jnp.transpose(h, (0, 1, 3, 2, 4, 5)).reshape(B, -1, c)
    mean = h.mean(-1, keepdims=True)
    var = ((h - mean) ** 2).mean(-1, keepdims=True)
    return (h - mean) / jnp.sqrt(var + EPS) * gamma + beta


if __name__ == "__main__":
    key = jax.random.PRNGKey(0)
    k1, k2, k3, k4 = jax.random.split(key, 4)

    B, H, W, dim = 2, 4, 4, 64                        # dim multiple of 64
    x = jax.random.normal(k1, (B, H * W, dim), dtype=jnp.float32)
    # nn.Linear(dim, 2*dim, bias=False).weight has shape (2*dim, dim)
    w_expand = jax.random.normal(k2, (2 * dim, dim), dtype=jnp.float32) * 0.02
    # nn.LayerNorm(dim // 32) affine params
    gamma = 1.0 + 0.1 * jax.random.normal(k3, (dim // 32,), dtype=jnp.float32)
    beta = 0.1 * jax.random.normal(k4, (dim // 32,), dtype=jnp.float32)

    # 1) correctness of the kernel math, full f32 path, tight tolerance
    out_f32 = patch_expand_x8(x, w_expand, gamma, beta, H, W,
                              compute_dtype=jnp.float32)
    out_f32 = jax.block_until_ready(out_f32)
    ref_f32 = _reference(x, w_expand, gamma, beta, H, W)
    assert out_f32.shape == (B, 64 * H * W, dim // 32), out_f32.shape
    assert jnp.allclose(out_f32, ref_f32, atol=2e-3, rtol=2e-3), float(
        jnp.max(jnp.abs(out_f32 - ref_f32)))

    # 2) default fast path (bf16 MXU inputs, f32 accumulate) against a
    #    reference that rounds x/w to bf16 the same way.
    out = patch_expand_x8(x, w_expand, gamma, beta, H, W)
    out = jax.block_until_ready(out)
    ref = _reference(x, w_expand, gamma, beta, H, W, compute_dtype=jnp.bfloat16)
    assert out.shape == (B, 64 * H * W, dim // 32), out.shape
    assert jnp.allclose(out, ref, atol=2e-2, rtol=2e-2), float(
        jnp.max(jnp.abs(out - ref)))

    print("KERNEL_OK")
</pallas_src>

<mosaic_0001>
module attributes {stable_mosaic.version = 11 : i64} {
  func.func @_expand_norm_kernel(%arg0: i32, %arg1: memref<32x64xf32, #tpu.memory_space<vmem>>, %arg2: memref<64x128xf32, #tpu.memory_space<vmem>>, %arg3: memref<128x64xf32, #tpu.memory_space<vmem>>, %arg4: memref<64x128xf32, #tpu.memory_space<vmem>>, %arg5: memref<1x128xf32, #tpu.memory_space<vmem>>, %arg6: memref<32x128xf32, #tpu.memory_space<vmem>>) attributes {dimension_semantics = [#tpu.dimension_semantics<parallel>], iteration_bounds = array<i64: 1>, scalar_prefetch = 0 : i64, scratch_operands = 0 : i64, tpu.core_type = #tpu.core_type<tc>, window_params = [{transform_indices = @transform_0, window_bounds = array<i64: 32, 64>}, {pipeline_mode = #tpu.pipeline_mode<synchronous>, transform_indices = @transform_1, window_bounds = array<i64: 64, 128>}, {pipeline_mode = #tpu.pipeline_mode<synchronous>, transform_indices = @transform_2, window_bounds = array<i64: 128, 64>}, {pipeline_mode = #tpu.pipeline_mode<synchronous>, transform_indices = @transform_3, window_bounds = array<i64: 64, 128>}, {pipeline_mode = #tpu.pipeline_mode<synchronous>, transform_indices = @transform_4, window_bounds = array<i64: 1, 128>}, {transform_indices = @transform_5, window_bounds = array<i64: 32, 128>}]} {
    %c0 = arith.constant 0 : index
    %c0_0 = arith.constant 0 : index
    %0 = vector.load %arg1[%c0, %c0_0] : memref<32x64xf32, #tpu.memory_space<vmem>>, vector<32x64xf32>
    %c0_1 = arith.constant 0 : index
    %c0_2 = arith.constant 0 : index
    %1 = vector.load %arg2[%c0_1, %c0_2] : memref<64x128xf32, #tpu.memory_space<vmem>>, vector<64x128xf32>
    %cst = arith.constant dense<0.000000e+00> : vector<32x128xf32>
    %2 = tpu.matmul %0, %1, %cst {dimension_numbers = #tpu.dot_dimension_numbers<[1], [0], [0], [1], [0, 0, 1, 1], [], []>} : vector<32x64xf32>, vector<64x128xf32>, vector<32x128xf32> -> vector<32x128xf32>
    %c0_3 = arith.constant 0 : index
    %c0_4 = arith.constant 0 : index
    %3 = vector.load %arg3[%c0_3, %c0_4] : memref<128x64xf32, #tpu.memory_space<vmem>>, vector<128x64xf32>
    %cst_5 = arith.constant dense<0.000000e+00> : vector<32x64xf32>
    %4 = tpu.matmul %2, %3, %cst_5 {dimension_numbers = #tpu.dot_dimension_numbers<[1], [0], [0], [1], [0, 0, 1, 1], [], []>} : vector<32x128xf32>, vector<128x64xf32>, vector<32x64xf32> -> vector<32x64xf32>
    %5 = arith.mulf %2, %2 : vector<32x128xf32>
    %cst_6 = arith.constant dense<0.000000e+00> : vector<32x64xf32>
    %6 = tpu.matmul %5, %3, %cst_6 {dimension_numbers = #tpu.dot_dimension_numbers<[1], [0], [0], [1], [0, 0, 1, 1], [], []>} : vector<32x128xf32>, vector<128x64xf32>, vector<32x64xf32> -> vector<32x64xf32>
    %7 = arith.mulf %4, %4 : vector<32x64xf32>
    %8 = arith.subf %6, %7 : vector<32x64xf32>
    %cst_7 = arith.constant 9.99999974E-6 : f32
    %9 = vector.broadcast %cst_7 : f32 to vector<32x64xf32>
    %10 = arith.addf %8, %9 : vector<32x64xf32>
    %11 = math.rsqrt %10 : vector<32x64xf32>
    %c0_8 = arith.constant 0 : index
    %c0_9 = arith.constant 0 : index
    %12 = vector.load %arg4[%c0_8, %c0_9] : memref<64x128xf32, #tpu.memory_space<vmem>>, vector<64x128xf32>
    %cst_10 = arith.constant dense<0.000000e+00> : vector<32x128xf32>
    %13 = tpu.matmul %11, %12, %cst_10 {dimension_numbers = #tpu.dot_dimension_numbers<[1], [0], [0], [1], [0, 0, 1, 1], [], []>} : vector<32x64xf32>, vector<64x128xf32>, vector<32x128xf32> -> vector<32x128xf32>
    %cst_11 = arith.constant 0.000000e+00 : f32
    %14 = vector.broadcast %cst_11 : f32 to vector<32x64xf32>
    %15 = arith.subf %14, %4 : vector<32x64xf32>
    %16 = arith.mulf %15, %11 : vector<32x64xf32>
    %cst_12 = arith.constant dense<0.000000e+00> : vector<32x128xf32>
    %17 = tpu.matmul %16, %12, %cst_12 {dimension_numbers = #tpu.dot_dimension_numbers<[1], [0], [0], [1], [0, 0, 1, 1], [], []>} : vector<32x64xf32>, vector<64x128xf32>, vector<32x128xf32> -> vector<32x128xf32>
    %18 = arith.mulf %2, %13 : vector<32x128xf32>
    %19 = arith.addf %18, %17 : vector<32x128xf32>
    %c0_13 = arith.constant 0 : index
    %c0_14 = arith.constant 0 : index
    %20 = vector.load %arg5[%c0_13, %c0_14] : memref<1x128xf32, #tpu.memory_space<vmem>>, vector<1x128xf32>
    %21 = vector.broadcast %20 : vector<1x128xf32> to vector<32x128xf32>
    %22 = arith.addf %19, %21 : vector<32x128xf32>
    %c0_15 = arith.constant 0 : index
    %c0_16 = arith.constant 0 : index
    %23 = vector.load %arg6[%c0_15, %c0_16] : memref<32x128xf32, #tpu.memory_space<vmem>>, vector<32x128xf32>
    tpu.vector_store %arg6[%c0_15, %c0_16], %22 {strides = array<i32>} : memref<32x128xf32, #tpu.memory_space<vmem>>, vector<32x128xf32>,
    return
  }
  func.func @transform_0(%arg0: i32) -> (i32, i32) {
    %c0_i32 = arith.constant 0 : i32
    %c0_i32_0 = arith.constant 0 : i32
    return %arg0, %c0_i32 : i32, i32
  }
  func.func @transform_1(%arg0: i32) -> (i32, i32) {
    %c0_i32 = arith.constant 0 : i32
    %c0_i32_0 = arith.constant 0 : i32
    %c0_i32_1 = arith.constant 0 : i32
    return %c0_i32, %c0_i32_0 : i32, i32
  }
  func.func @transform_2(%arg0: i32) -> (i32, i32) {
    %c0_i32 = arith.constant 0 : i32
    %c0_i32_0 = arith.constant 0 : i32
    %c0_i32_1 = arith.constant 0 : i32
    return %c0_i32, %c0_i32_0 : i32, i32
  }
  func.func @transform_3(%arg0: i32) -> (i32, i32) {
    %c0_i32 = arith.constant 0 : i32
    %c0_i32_0 = arith.constant 0 : i32
    %c0_i32_1 = arith.constant 0 : i32
    return %c0_i32, %c0_i32_0 : i32, i32
  }
  func.func @transform_4(%arg0: i32) -> (i32, i32) {
    %c0_i32 = arith.constant 0 : i32
    %c0_i32_0 = arith.constant 0 : i32
    %c0_i32_1 = arith.constant 0 : i32
    return %c0_i32, %c0_i32_0 : i32, i32
  }
  func.func @transform_5(%arg0: i32) -> (i32, i32) {
    %c0_i32 = arith.constant 0 : i32
    %c0_i32_0 = arith.constant 0 : i32
    return %arg0, %c0_i32 : i32, i32
  }
}

</mosaic_0001>

<llo_original>
// kernel: tpu_custom_call.1
$region0: #{tpu_custom_call.1}
  #allocation0 [shape = 'u32[]', space=smem, size = 0x4, offset = 0x4, fixed_abs, tag = 'smem constant byte address 0x4 - core index']
  #allocation1 [shape = 'u32[144,128]{1,0:T(1,128)}', space=vmem, size = 0x12000, scoped, tag = 'internal scratch']
  %s0 = inlined_call_operand.vmem [shape: f32[32,64], index: 0, kind: input, shape index: {}]
  %s1 = inlined_call_operand.vmem [shape: f32[64,128], index: 1, kind: input, shape index: {}]
  %s2 = inlined_call_operand.vmem [shape: f32[128,64], index: 2, kind: input, shape index: {}]
  %s3 = inlined_call_operand.vmem [shape: f32[64,128], index: 3, kind: input, shape index: {}]
  %s4 = inlined_call_operand.vmem [shape: f32[1,128], index: 4, kind: input, shape index: {}]
  %s5 = inlined_call_operand.hbm [shape: f32[32,128], index: 5, kind: output, shape index: {}]
  %s6 = sld [smem:[#allocation0]]
  $region30: #{tpu_custom_call.1} parent=0
    _
  %s8 = ssub.s32 1, %s6
  %s9 = scalar_select 0, %s8, %s6
  $region1: #{tpu_custom_call.1} parent=0
    #allocation2 [shape = 'u8[16384]{0}', space=vmem, size = 0x4000, scoped, tag = 'output window, operand 0, single buffered']
    #allocation3 [shape = 's32[1]{0}', space=sflag, size = 0x4, scoped, tag = 'scoped memory for tpu_custom_call.1']
    %10 = vsyncpa [#allocation3], 0
    // Predicated region
    $region2: #{tpu_custom_call.1} parent=1 // pred_check
      _
    $region3: #{tpu_custom_call.1} parent=1 // pred_check_branch
      %12 = sbr.rel (0) target = $region5
    $region4: #{tpu_custom_call.1} parent=1 // pred_region
      _
    $region5: #{tpu_custom_call.1} parent=1 // pred_fallthru
      _
    // Predicated region
    $region6: #{tpu_custom_call.1} parent=1 // pred_check
      _
    $region7: #{tpu_custom_call.1} parent=1 // pred_check_branch
      %14 = sbr.rel (0) target = $region9
    $region8: #{tpu_custom_call.1} parent=1 // pred_region
      _
    $region9: #{tpu_custom_call.1} parent=1 // pred_fallthru
      _
    // Predicated region
    $region10: #{tpu_custom_call.1} parent=1 // pred_check
      _
    $region11: #{tpu_custom_call.1} parent=1 // pred_check_branch
      %16 = sbr.rel (0) target = $region13
    $region12: #{tpu_custom_call.1} parent=1 // pred_region
      _
    $region13: #{tpu_custom_call.1} parent=1 // pred_fallthru
      _
    // Predicated region
    $region14: #{tpu_custom_call.1} parent=1 // pred_check
      _
    $region15: #{tpu_custom_call.1} parent=1 // pred_check_branch
      %18 = sbr.rel (0) target = $region17
    $region16: #{tpu_custom_call.1} parent=1 // pred_region
      _
    $region17: #{tpu_custom_call.1} parent=1 // pred_fallthru
      _
    // Predicated region
    $region18: #{tpu_custom_call.1} parent=1 // pred_check
      _
    $region19: #{tpu_custom_call.1} parent=1 // pred_check_branch
      %20 = sbr.rel (0) target = $region21
    $region20: #{tpu_custom_call.1} parent=1 // pred_region
      _
    $region21: #{tpu_custom_call.1} parent=1 // pred_fallthru
      _
    %v21 = vld [vmem:[%s0] sm:$0xff]
    %v22 = vld [vmem:[%s0 + $0x8] sm:$0xff]
    %v23 = vld [vmem:[%s0 + $0x10] sm:$0xff]
    %v24 = vld [vmem:[%s0 + $0x18] sm:$0xff]
    %v25 = vld [vmem:[%s1] sm:$0xff]
    %v26 = vld [vmem:[%s1 + $0x8] sm:$0xff]
    %v27 = vld [vmem:[%s1 + $0x10] sm:$0xff]
    %v28 = vld [vmem:[%s1 + $0x18] sm:$0xff]
    %v29 = vld [vmem:[%s1 + $0x20] sm:$0xff]
    %v30 = vld [vmem:[%s1 + $0x28] sm:$0xff]
    %v31 = vld [vmem:[%s1 + $0x30] sm:$0xff]
    %v32 = vld [vmem:[%s1 + $0x38] sm:$0xff]
    %vm33 = vcmask 523264
    %v35 = vsel %vm33, %v21, 0
    %v38 = vsel %vm33, %v22, 0
    %v41 = vsel %vm33, %v23, 0
    %v44 = vsel %vm33, %v24, 0
    %46 = vmatprep.subr.mxu0 0.0
    %47 = vmatpush1.msra.mxu0 0.0
    %48 = vmatprep.subr.mxu0 0.0
    %49 = vmatpush1.msra.mxu0 0.0
    %50 = vmatprep.subr.mxu0 0.0
    %51 = vmatpush1.msra.mxu0 0.0
    %52 = vmatprep.subr.mxu0 0.0
    %53 = vmatpush1.msra.mxu0 0.0
    %54 = vmatprep.subr.mxu0 0.0
    %55 = vmatpush1.msra.mxu0 0.0
    %56 = vmatprep.subr.mxu0 0.0
    %57 = vmatpush1.msra.mxu0 0.0
    %58 = vmatprep.subr.mxu0 0.0
    %59 = vmatpush1.msra.mxu0 0.0
    %60 = vmatprep.subr.mxu0 0.0
    %61 = vmatpush1.msra.mxu0 0.0
    %62 = vmatprep.subr.mxu0 0.0
    %63 = vmatpush1.msra.mxu0 %v32
    %64 = vmatprep.subr.mxu0 0.0
    %65 = vmatpush1.msra.mxu0 %v31
    %66 = vmatprep.subr.mxu0 0.0
    %67 = vmatpush1.msra.mxu0 %v30
    %68 = vmatprep.subr.mxu0 0.0
    %69 = vmatpush1.msra.mxu0 %v29
    %70 = vmatprep.subr.mxu0 0.0
    %71 = vmatpush1.msra.mxu0 %v28
    %72 = vmatprep.subr.mxu0 0.0
    %73 = vmatpush1.msra.mxu0 %v27
    %74 = vmatprep.subr.mxu0 0.0
    %75 = vmatpush1.msra.mxu0 %v26
    %76 = vmatprep.subr.mxu0 0.0
    %77 = vmatpush1.msra.mxu0 %v25
    %78 = vmatprep.subr.mxu0 0.0
    %79 = vmatpush2.msra.mxu0 0.0
    %80 = vmatprep.subr.mxu0 0.0
    %81 = vmatpush2.msra.mxu0 0.0
    %82 = vmatprep.subr.mxu0 0.0
    %83 = vmatpush2.msra.mxu0 0.0
    %84 = vmatprep.subr.mxu0 0.0
    %85 = vmatpush2.msra.mxu0 0.0
    %86 = vmatprep.subr.mxu0 0.0
    %87 = vmatpush2.msra.mxu0 0.0
    %88 = vmatprep.subr.mxu0 0.0
    %89 = vmatpush2.msra.mxu0 0.0
    %90 = vmatprep.subr.mxu0 0.0
    %91 = vmatpush2.msra.mxu0 0.0
    %92 = vmatprep.subr.mxu0 0.0
    %93 = vmatpush2.msra.mxu0 0.0
    %94 = vmatprep.subr.mxu0 0.0
    %95 = vmatpush2.msra.mxu0 0.0
    %96 = vmatprep.subr.mxu0 0.0
    %97 = vmatpush2.msra.mxu0 0.0
    %98 = vmatprep.subr.mxu0 0.0
    %99 = vmatpush2.msra.mxu0 0.0
    %100 = vmatprep.subr.mxu0 0.0
    %101 = vmatpush2.msra.mxu0 0.0
    %102 = vmatprep.subr.mxu0 0.0
    %103 = vmatpush2.msra.mxu0 0.0
    %104 = vmatprep.subr.mxu0 0.0
    %105 = vmatpush2.msra.mxu0 0.0
    %106 = vmatprep.subr.mxu0 0.0
    %107 = vmatpush2.msra.mxu0 0.0
    %108 = vmatprep.subr.mxu0 0.0
    %109 = vmatpush2.msra.mxu0 0.0
    %110 = vmatprep.mubr.f32.mxu0 0.0
    %111 = vmatmul.mubr.f32.gmra.mxu0 %v35
    %v112 = vpop.f32.mrf.mxu0
    %v113 = vadd.f32 0.0, %v112
    %v114 = vpop.f32.mrf.mxu0
    %115 = vmatprep.mubr.f32.mxu0 0.0
    %116 = vmatmul.mubr.f32.gmra.mxu0 %v38
    %v117 = vpop.f32.mrf.mxu0
    %v118 = vadd.f32 0.0, %v117
    %v119 = vpop.f32.mrf.mxu0
    %120 = vmatprep.mubr.f32.mxu0 0.0
    %121 = vmatmul.mubr.f32.gmra.mxu0 %v41
    %v122 = vpop.f32.mrf.mxu0
    %v123 = vadd.f32 0.0, %v122
    %v124 = vpop.f32.mrf.mxu0
    %125 = vmatprep.mubr.f32.mxu0 0.0
    %126 = vmatmul.mubr.f32.gmra.mxu0 %v44
    %v127 = vpop.f32.mrf.mxu0
    %v128 = vadd.f32 0.0, %v127
    %v129 = vpop.f32.mrf.mxu0
    %130 = vdwg.mxu0
    %v131 = vld [vmem:[%s2] sm:$0xff]
    %v132 = vld [vmem:[%s2 + $0x8] sm:$0xff]
    %v133 = vld [vmem:[%s2 + $0x10] sm:$0xff]
    %v134 = vld [vmem:[%s2 + $0x18] sm:$0xff]
    %v135 = vld [vmem:[%s2 + $0x20] sm:$0xff]
    %v136 = vld [vmem:[%s2 + $0x28] sm:$0xff]
    %v137 = vld [vmem:[%s2 + $0x30] sm:$0xff]
    %v138 = vld [vmem:[%s2 + $0x38] sm:$0xff]
    %v139 = vld [vmem:[%s2 + $0x40] sm:$0xff]
    %v140 = vld [vmem:[%s2 + $0x48] sm:$0xff]
    %v141 = vld [vmem:[%s2 + $0x50] sm:$0xff]
    %v142 = vld [vmem:[%s2 + $0x58] sm:$0xff]
    %v143 = vld [vmem:[%s2 + $0x60] sm:$0xff]
    %v144 = vld [vmem:[%s2 + $0x68] sm:$0xff]
    %v145 = vld [vmem:[%s2 + $0x70] sm:$0xff]
    %v146 = vld [vmem:[%s2 + $0x78] sm:$0xff]
    %147 = vmatprep.subr.mxu0 0.0
    %148 = vmatpush1.msra.mxu0 %v146
    %149 = vmatprep.subr.mxu0 0.0
    %150 = vmatpush1.msra.mxu0 %v145
    %151 = vmatprep.subr.mxu0 0.0
    %152 = vmatpush1.msra.mxu0 %v144
    %153 = vmatprep.subr.mxu0 0.0
    %154 = vmatpush1.msra.mxu0 %v143
    %155 = vmatprep.subr.mxu0 0.0
    %156 = vmatpush1.msra.mxu0 %v142
    %157 = vmatprep.subr.mxu0 0.0
    %158 = vmatpush1.msra.mxu0 %v141
    %159 = vmatprep.subr.mxu0 0.0
    %160 = vmatpush1.msra.mxu0 %v140
    %161 = vmatprep.subr.mxu0 0.0
    %162 = vmatpush1.msra.mxu0 %v139
    %163 = vmatprep.subr.mxu0 0.0
    %164 = vmatpush1.msra.mxu0 %v138
    %165 = vmatprep.subr.mxu0 0.0
    %166 = vmatpush1.msra.mxu0 %v137
    %167 = vmatprep.subr.mxu0 0.0
    %168 = vmatpush1.msra.mxu0 %v136
    %169 = vmatprep.subr.mxu0 0.0
    %170 = vmatpush1.msra.mxu0 %v135
    %171 = vmatprep.subr.mxu0 0.0
    %172 = vmatpush1.msra.mxu0 %v134
    %173 = vmatprep.subr.mxu0 0.0
    %174 = vmatpush1.msra.mxu0 %v133
    %175 = vmatprep.subr.mxu0 0.0
    %176 = vmatpush1.msra.mxu0 %v132
    %177 = vmatprep.subr.mxu0 0.0
    %178 = vmatpush1.msra.mxu0 %v131
    %179 = vmatprep.subr.mxu0 0.0
    %180 = vmatpush2.msra.mxu0 0.0
    %181 = vmatprep.subr.mxu0 0.0
    %182 = vmatpush2.msra.mxu0 0.0
    %183 = vmatprep.subr.mxu0 0.0
    %184 = vmatpush2.msra.mxu0 0.0
    %185 = vmatprep.subr.mxu0 0.0
    %186 = vmatpush2.msra.mxu0 0.0
    %187 = vmatprep.subr.mxu0 0.0
    %188 = vmatpush2.msra.mxu0 0.0
    %189 = vmatprep.subr.mxu0 0.0
    %190 = vmatpush2.msra.mxu0 0.0
    %191 = vmatprep.subr.mxu0 0.0
    %192 = vmatpush2.msra.mxu0 0.0
    %193 = vmatprep.subr.mxu0 0.0
    %194 = vmatpush2.msra.mxu0 0.0
    %195 = vmatprep.subr.mxu0 0.0
    %196 = vmatpush2.msra.mxu0 0.0
    %197 = vmatprep.subr.mxu0 0.0
    %198 = vmatpush2.msra.mxu0 0.0
    %199 = vmatprep.subr.mxu0 0.0
    %200 = vmatpush2.msra.mxu0 0.0
    %201 = vmatprep.subr.mxu0 0.0
    %202 = vmatpush2.msra.mxu0 0.0
    %203 = vmatprep.subr.mxu0 0.0
    %204 = vmatpush2.msra.mxu0 0.0
    %205 = vmatprep.subr.mxu0 0.0
    %206 = vmatpush2.msra.mxu0 0.0
    %207 = vmatprep.subr.mxu0 0.0
    %208 = vmatpush2.msra.mxu0 0.0
    %209 = vmatprep.subr.mxu0 0.0
    %210 = vmatpush2.msra.mxu0 0.0
    %211 = vmatprep.mubr.f32.mxu0 0.0
    %212 = vmatmul.mubr.f32.gmra.mxu0 %v113
    %v213 = vpop.f32.mrf.mxu0
    %v214 = vadd.f32 0.0, %v213
    %v215 = vpop.f32.mrf.mxu0
    %216 = vmatprep.mubr.f32.mxu0 0.0
    %217 = vmatmul.mubr.f32.gmra.mxu0 %v118
    %v218 = vpop.f32.mrf.mxu0
    %v219 = vadd.f32 0.0, %v218
    %v220 = vpop.f32.mrf.mxu0
    %221 = vmatprep.mubr.f32.mxu0 0.0
    %222 = vmatmul.mubr.f32.gmra.mxu0 %v123
    %v223 = vpop.f32.mrf.mxu0
    %v224 = vadd.f32 0.0, %v223
    %v225 = vpop.f32.mrf.mxu0
    %226 = vmatprep.mubr.f32.mxu0 0.0
    %227 = vmatmul.mubr.f32.gmra.mxu0 %v128
    %v228 = vpop.f32.mrf.mxu0
    %v229 = vadd.f32 0.0, %v228
    %v230 = vpop.f32.mrf.mxu0
    %231 = vdwg.mxu0
    %v232 = vmul.f32 %v113, %v113
    %v233 = vmul.f32 %v118, %v118
    %v234 = vmul.f32 %v123, %v123
    %v235 = vmul.f32 %v128, %v128
    %236 = vmatprep.subr.mxu0 0.0
    %237 = vmatpush1.msra.mxu0 %v146
    %238 = vmatprep.subr.mxu0 0.0
    %239 = vmatpush1.msra.mxu0 %v145
    %240 = vmatprep.subr.mxu0 0.0
    %241 = vmatpush1.msra.mxu0 %v144
    %242 = vmatprep.subr.mxu0 0.0
    %243 = vmatpush1.msra.mxu0 %v143
    %244 = vmatprep.subr.mxu0 0.0
    %245 = vmatpush1.msra.mxu0 %v142
    %246 = vmatprep.subr.mxu0 0.0
    %247 = vmatpush1.msra.mxu0 %v141
    %248 = vmatprep.subr.mxu0 0.0
    %249 = vmatpush1.msra.mxu0 %v140
    %250 = vmatprep.subr.mxu0 0.0
    %251 = vmatpush1.msra.mxu0 %v139
    %252 = vmatprep.subr.mxu0 0.0
    %253 = vmatpush1.msra.mxu0 %v138
    %254 = vmatprep.subr.mxu0 0.0
    %255 = vmatpush1.msra.mxu0 %v137
    %256 = vmatprep.subr.mxu0 0.0
    %257 = vmatpush1.msra.mxu0 %v136
    %258 = vmatprep.subr.mxu0 0.0
    %259 = vmatpush1.msra.mxu0 %v135
    %260 = vmatprep.subr.mxu0 0.0
    %261 = vmatpush1.msra.mxu0 %v134
    %262 = vmatprep.subr.mxu0 0.0
    %263 = vmatpush1.msra.mxu0 %v133
    %264 = vmatprep.subr.mxu0 0.0
    %265 = vmatpush1.msra.mxu0 %v132
    %266 = vmatprep.subr.mxu0 0.0
    %267 = vmatpush1.msra.mxu0 %v131
    %268 = vmatprep.subr.mxu0 0.0
    %269 = vmatpush2.msra.mxu0 0.0
    %270 = vmatprep.subr.mxu0 0.0
    %271 = vmatpush2.msra.mxu0 0.0
    %272 = vmatprep.subr.mxu0 0.0
    %273 = vmatpush2.msra.mxu0 0.0
    %274 = vmatprep.subr.mxu0 0.0
    %275 = vmatpush2.msra.mxu0 0.0
    %276 = vmatprep.subr.mxu0 0.0
    %277 = vmatpush2.msra.mxu0 0.0
    %278 = vmatprep.subr.mxu0 0.0
    %279 = vmatpush2.msra.mxu0 0.0
    %280 = vmatprep.subr.mxu0 0.0
    %281 = vmatpush2.msra.mxu0 0.0
    %282 = vmatprep.subr.mxu0 0.0
    %283 = vmatpush2.msra.mxu0 0.0
    %284 = vmatprep.subr.mxu0 0.0
    %285 = vmatpush2.msra.mxu0 0.0
    %286 = vmatprep.subr.mxu0 0.0
    %287 = vmatpush2.msra.mxu0 0.0
    %288 = vmatprep.subr.mxu0 0.0
    %289 = vmatpush2.msra.mxu0 0.0
    %290 = vmatprep.subr.mxu0 0.0
    %291 = vmatpush2.msra.mxu0 0.0
    %292 = vmatprep.subr.mxu0 0.0
    %293 = vmatpush2.msra.mxu0 0.0
    %294 = vmatprep.subr.mxu0 0.0
    %295 = vmatpush2.msra.mxu0 0.0
    %296 = vmatprep.subr.mxu0 0.0
    %297 = vmatpush2.msra.mxu0 0.0
    %298 = vmatprep.subr.mxu0 0.0
    %299 = vmatpush2.msra.mxu0 0.0
    %300 = vmatprep.mubr.f32.mxu0 0.0
    %301 = vmatmul.mubr.f32.gmra.mxu0 %v232
    %v302 = vpop.f32.mrf.mxu0
    %v303 = vadd.f32 0.0, %v302
    %v304 = vpop.f32.mrf.mxu0
    %305 = vmatprep.mubr.f32.mxu0 0.0
    %306 = vmatmul.mubr.f32.gmra.mxu0 %v233
    %v307 = vpop.f32.mrf.mxu0
    %v308 = vadd.f32 0.0, %v307
    %v309 = vpop.f32.mrf.mxu0
    %310 = vmatprep.mubr.f32.mxu0 0.0
    %311 = vmatmul.mubr.f32.gmra.mxu0 %v234
    %v312 = vpop.f32.mrf.mxu0
    %v313 = vadd.f32 0.0, %v312
    %v314 = vpop.f32.mrf.mxu0
    %315 = vmatprep.mubr.f32.mxu0 0.0
    %316 = vmatmul.mubr.f32.gmra.mxu0 %v235
    %v317 = vpop.f32.mrf.mxu0
    %v318 = vadd.f32 0.0, %v317
    %v319 = vpop.f32.mrf.mxu0
    %320 = vdwg.mxu0
    %v321 = vmul.f32 %v214, %v214
    %v322 = vmul.f32 %v219, %v219
    %v323 = vmul.f32 %v224, %v224
    %v324 = vmul.f32 %v229, %v229
    %v325 = vsub.f32 %v303, %v321
    %v326 = vsub.f32 %v308, %v322
    %v327 = vsub.f32 %v313, %v323
    %v328 = vsub.f32 %v318, %v324
    %v329 = vadd.f32 %v325, 1e-05
    %v330 = vadd.f32 %v326, 1e-05
    %v331 = vadd.f32 %v327, 1e-05
    %v332 = vadd.f32 %v328, 1e-05
    %v333 = vrsqrt.pop %v329
    %v334 = vrsqrt.pop %v330
    %v335 = vrsqrt.pop %v331
    %v336 = vrsqrt.pop %v332
    %v337 = vld [vmem:[%s3] sm:$0xff]
    %v338 = vld [vmem:[%s3 + $0x8] sm:$0xff]
    %v339 = vld [vmem:[%s3 + $0x10] sm:$0xff]
    %v340 = vld [vmem:[%s3 + $0x18] sm:$0xff]
    %v341 = vld [vmem:[%s3 + $0x20] sm:$0xff]
    %v342 = vld [vmem:[%s3 + $0x28] sm:$0xff]
    %v343 = vld [vmem:[%s3 + $0x30] sm:$0xff]
    %v344 = vld [vmem:[%s3 + $0x38] sm:$0xff]
    %v346 = vsel %vm33, %v333, 0
    %v349 = vsel %vm33, %v334, 0
    %v352 = vsel %vm33, %v335, 0
    %v355 = vsel %vm33, %v336, 0
    %357 = vmatprep.subr.mxu0 0.0
    %358 = vmatpush1.msra.mxu0 0.0
    %359 = vmatprep.subr.mxu0 0.0
    %360 = vmatpush1.msra.mxu0 0.0
    %361 = vmatprep.subr.mxu0 0.0
    %362 = vmatpush1.msra.mxu0 0.0
    %363 = vmatprep.subr.mxu0 0.0
    %364 = vmatpush1.msra.mxu0 0.0
    %365 = vmatprep.subr.mxu0 0.0
    %366 = vmatpush1.msra.mxu0 0.0
    %367 = vmatprep.subr.mxu0 0.0
    %368 = vmatpush1.msra.mxu0 0.0
    %369 = vmatprep.subr.mxu0 0.0
    %370 = vmatpush1.msra.mxu0 0.0
    %371 = vmatprep.subr.mxu0 0.0
    %372 = vmatpush1.msra.mxu0 0.0
    %373 = vmatprep.subr.mxu0 0.0
    %374 = vmatpush1.msra.mxu0 %v344
    %375 = vmatprep.subr.mxu0 0.0
    %376 = vmatpush1.msra.mxu0 %v343
    %377 = vmatprep.subr.mxu0 0.0
    %378 = vmatpush1.msra.mxu0 %v342
    %379 = vmatprep.subr.mxu0 0.0
    %380 = vmatpush1.msra.mxu0 %v341
    %381 = vmatprep.subr.mxu0 0.0
    %382 = vmatpush1.msra.mxu0 %v340
    %383 = vmatprep.subr.mxu0 0.0
    %384 = vmatpush1.msra.mxu0 %v339
    %385 = vmatprep.subr.mxu0 0.0
    %386 = vmatpush1.msra.mxu0 %v338
    %387 = vmatprep.subr.mxu0 0.0
    %388 = vmatpush1.msra.mxu0 %v337
    %389 = vmatprep.subr.mxu0 0.0
    %390 = vmatpush2.msra.mxu0 0.0
    %391 = vmatprep.subr.mxu0 0.0
    %392 = vmatpush2.msra.mxu0 0.0
    %393 = vmatprep.subr.mxu0 0.0
    %394 = vmatpush2.msra.mxu0 0.0
    %395 = vmatprep.subr.mxu0 0.0
    %396 = vmatpush2.msra.mxu0 0.0
    %397 = vmatprep.subr.mxu0 0.0
    %398 = vmatpush2.msra.mxu0 0.0
    %399 = vmatprep.subr.mxu0 0.0
    %400 = vmatpush2.msra.mxu0 0.0
    %401 = vmatprep.subr.mxu0 0.0
    %402 = vmatpush2.msra.mxu0 0.0
    %403 = vmatprep.subr.mxu0 0.0
    %404 = vmatpush2.msra.mxu0 0.0
    %405 = vmatprep.subr.mxu0 0.0
    %406 = vmatpush2.msra.mxu0 0.0
    %407 = vmatprep.subr.mxu0 0.0
    %408 = vmatpush2.msra.mxu0 0.0
    %409 = vmatprep.subr.mxu0 0.0
    %410 = vmatpush2.msra.mxu0 0.0
    %411 = vmatprep.subr.mxu0 0.0
    %412 = vmatpush2.msra.mxu0 0.0
    %413 = vmatprep.subr.mxu0 0.0
    %414 = vmatpush2.msra.mxu0 0.0
    %415 = vmatprep.subr.mxu0 0.0
    %416 = vmatpush2.msra.mxu0 0.0
    %417 = vmatprep.subr.mxu0 0.0
    %418 = vmatpush2.msra.mxu0 0.0
    %419 = vmatprep.subr.mxu0 0.0
    %420 = vmatpush2.msra.mxu0 0.0
    %421 = vmatprep.mubr.f32.mxu0 0.0
    %422 = vmatmul.mubr.f32.gmra.mxu0 %v346
    %v423 = vpop.f32.mrf.mxu0
    %v424 = vadd.f32 0.0, %v423
    %v425 = vpop.f32.mrf.mxu0
    %426 = vmatprep.mubr.f32.mxu0 0.0
    %427 = vmatmul.mubr.f32.gmra.mxu0 %v349
    %v428 = vpop.f32.mrf.mxu0
    %v429 = vadd.f32 0.0, %v428
    %v430 = vpop.f32.mrf.mxu0
    %431 = vmatprep.mubr.f32.mxu0 0.0
    %432 = vmatmul.mubr.f32.gmra.mxu0 %v352
    %v433 = vpop.f32.mrf.mxu0
    %v434 = vadd.f32 0.0, %v433
    %v435 = vpop.f32.mrf.mxu0
    %436 = vmatprep.mubr.f32.mxu0 0.0
    %437 = vmatmul.mubr.f32.gmra.mxu0 %v355
    %v438 = vpop.f32.mrf.mxu0
    %v439 = vadd.f32 0.0, %v438
    %v440 = vpop.f32.mrf.mxu0
    %441 = vdwg.mxu0
    %v442 = vsub.f32 0.0, %v214
    %v443 = vsub.f32 0.0, %v219
    %v444 = vsub.f32 0.0, %v224
    %v445 = vsub.f32 0.0, %v229
    %v446 = vmul.f32 %v442, %v333
    %v447 = vmul.f32 %v443, %v334
    %v448 = vmul.f32 %v444, %v335
    %v449 = vmul.f32 %v445, %v336
    %v451 = vsel %vm33, %v446, 0
    %v454 = vsel %vm33, %v447, 0
    %v457 = vsel %vm33, %v448, 0
    %v460 = vsel %vm33, %v449, 0
    %462 = vmatprep.subr.mxu0 0.0
    %463 = vmatpush1.msra.mxu0 0.0
    %464 = vmatprep.subr.mxu0 0.0
    %465 = vmatpush1.msra.mxu0 0.0
    %466 = vmatprep.subr.mxu0 0.0
    %467 = vmatpush1.msra.mxu0 0.0
    %468 = vmatprep.subr.mxu0 0.0
    %469 = vmatpush1.msra.mxu0 0.0
    %470 = vmatprep.subr.mxu0 0.0
    %471 = vmatpush1.msra.mxu0 0.0
    %472 = vmatprep.subr.mxu0 0.0
    %473 = vmatpush1.msra.mxu0 0.0
    %474 = vmatprep.subr.mxu0 0.0
    %475 = vmatpush1.msra.mxu0 0.0
    %476 = vmatprep.subr.mxu0 0.0
    %477 = vmatpush1.msra.mxu0 0.0
    %478 = vmatprep.subr.mxu0 0.0
    %479 = vmatpush1.msra.mxu0 %v344
    %480 = vmatprep.subr.mxu0 0.0
    %481 = vmatpush1.msra.mxu0 %v343
    %482 = vmatprep.subr.mxu0 0.0
    %483 = vmatpush1.msra.mxu0 %v342
    %484 = vmatprep.subr.mxu0 0.0
    %485 = vmatpush1.msra.mxu0 %v341
    %486 = vmatprep.subr.mxu0 0.0
    %487 = vmatpush1.msra.mxu0 %v340
    %488 = vmatprep.subr.mxu0 0.0
    %489 = vmatpush1.msra.mxu0 %v339
    %490 = vmatprep.subr.mxu0 0.0
    %491 = vmatpush1.msra.mxu0 %v338
    %492 = vmatprep.subr.mxu0 0.0
    %493 = vmatpush1.msra.mxu0 %v337
    %494 = vmatprep.subr.mxu0 0.0
    %495 = vmatpush2.msra.mxu0 0.0
    %496 = vmatprep.subr.mxu0 0.0
    %497 = vmatpush2.msra.mxu0 0.0
    %498 = vmatprep.subr.mxu0 0.0
    %499 = vmatpush2.msra.mxu0 0.0
    %500 = vmatprep.subr.mxu0 0.0
    %501 = vmatpush2.msra.mxu0 0.0
    %502 = vmatprep.subr.mxu0 0.0
    %503 = vmatpush2.msra.mxu0 0.0
    %504 = vmatprep.subr.mxu0 0.0
    %505 = vmatpush2.msra.mxu0 0.0
    %506 = vmatprep.subr.mxu0 0.0
    %507 = vmatpush2.msra.mxu0 0.0
    %508 = vmatprep.subr.mxu0 0.0
    %509 = vmatpush2.msra.mxu0 0.0
    %510 = vmatprep.subr.mxu0 0.0
    %511 = vmatpush2.msra.mxu0 0.0
    %512 = vmatprep.subr.mxu0 0.0
    %513 = vmatpush2.msra.mxu0 0.0
    %514 = vmatprep.subr.mxu0 0.0
    %515 = vmatpush2.msra.mxu0 0.0
    %516 = vmatprep.subr.mxu0 0.0
    %517 = vmatpush2.msra.mxu0 0.0
    %518 = vmatprep.subr.mxu0 0.0
    %519 = vmatpush2.msra.mxu0 0.0
    %520 = vmatprep.subr.mxu0 0.0
    %521 = vmatpush2.msra.mxu0 0.0
    %522 = vmatprep.subr.mxu0 0.0
    %523 = vmatpush2.msra.mxu0 0.0
    %524 = vmatprep.subr.mxu0 0.0
    %525 = vmatpush2.msra.mxu0 0.0
    %526 = vmatprep.mubr.f32.mxu0 0.0
    %527 = vmatmul.mubr.f32.gmra.mxu0 %v451
    %v528 = vpop.f32.mrf.mxu0
    %v529 = vadd.f32 0.0, %v528
    %v530 = vpop.f32.mrf.mxu0
    %531 = vmatprep.mubr.f32.mxu0 0.0
    %532 = vmatmul.mubr.f32.gmra.mxu0 %v454
    %v533 = vpop.f32.mrf.mxu0
    %v534 = vadd.f32 0.0, %v533
    %v535 = vpop.f32.mrf.mxu0
    %536 = vmatprep.mubr.f32.mxu0 0.0
    %537 = vmatmul.mubr.f32.gmra.mxu0 %v457
    %v538 = vpop.f32.mrf.mxu0
    %v539 = vadd.f32 0.0, %v538
    %v540 = vpop.f32.mrf.mxu0
    %541 = vmatprep.mubr.f32.mxu0 0.0
    %542 = vmatmul.mubr.f32.gmra.mxu0 %v460
    %v543 = vpop.f32.mrf.mxu0
    %v544 = vadd.f32 0.0, %v543
    %v545 = vpop.f32.mrf.mxu0
    %546 = vdwg.mxu0
    %v547 = vmul.f32 %v113, %v424
    %v548 = vmul.f32 %v118, %v429
    %v549 = vmul.f32 %v123, %v434
    %v550 = vmul.f32 %v128, %v439
    %v551 = vadd.f32 %v547, %v529
    %v552 = vadd.f32 %v548, %v534
    %v553 = vadd.f32 %v549, %v539
    %v554 = vadd.f32 %v550, %v544
    %v555 = vld [vmem:[%s4] sm:$0x1]
    %v557 = vlaneseq
    %v558 = vshrl.u32 %v557, 7
    %v559 = vsub.s32 0, %v558
    %v560 = vrot.slane %v555, %v559
    %v562 = vadd.f32 %v551, %v560
    %v563 = vadd.f32 %v552, %v560
    %v564 = vadd.f32 %v553, %v560
    %v565 = vadd.f32 %v554, %v560
    %566 = vst [vmem:[#allocation2] sm:$0xff] %v562
    %567 = vst [vmem:[#allocation2 + $0x8] sm:$0xff] %v563
    %568 = vst [vmem:[#allocation2 + $0x10] sm:$0xff] %v564
    %569 = vst [vmem:[#allocation2 + $0x18] sm:$0xff] %v565
    // Predicated region
    $region22: #{tpu_custom_call.1} parent=1 // pred_check
      _
    $region23: #{tpu_custom_call.1} parent=1 // pred_check_branch
      %571 = sbr.rel (0) target = $region25
    $region24: #{tpu_custom_call.1} parent=1 // pred_region
      %s573 = ssub.s32 512, 512
      %574 = vsyncadd [#allocation3], %s573
      %s575 = sshll.u32 [#allocation2], 4
      %s576 = int_to_ptr.vmem [resolvable:$true] %s575
      %581 = dma.vmem_to_hbm [thread:$0]  %s576, 512, %s5, [#allocation3], 128, 128, 8
    $region25: #{tpu_custom_call.1} parent=1 // pred_fallthru
      _
    // Predicated region
    $region26: #{tpu_custom_call.1} parent=1 // pred_check
      _
    $region27: #{tpu_custom_call.1} parent=1 // pred_check_branch
      %583 = sbr.rel (0) target = $region29
    $region28: #{tpu_custom_call.1} parent=1 // pred_region
      %584 = dma.done [#allocation3], 512
    $region29: #{tpu_custom_call.1} parent=1 // pred_fallthru
      _
    %585 = vsyncpa [#allocation3], 1

</llo_original>
